<compile_context>
chip_gen: v5e
topology: v5e:2x2
jax: 0.10.0
libtpu: 0.0.40
codegen_flags: <defaults>
</compile_context>

<pallas_src>
import jax
import jax.numpy as jnp
from jax.experimental import pallas as pl
from jax.experimental.pallas import tpu as pltpu


def _round_up(x: int, m: int) -> int:
    return ((x + m - 1) // m) * m


def reclassify_head_kernel(x_ref, w_ref, b_ref, o_ref):
    # x_ref: (TB, K)  gathered & flattened hidden states for this batch tile
    # w_ref: (K, G)   full classifier weight (VMEM-resident, constant index_map)
    # b_ref: (1, G)   f32 bias (resident)
    # o_ref: (TB, G)  f32 logits for this batch tile (written once per tile)
    acc = jnp.dot(x_ref[...], w_ref[...], preferred_element_type=jnp.float32)
    o_ref[...] = (acc + b_ref[...]).astype(o_ref.dtype)


def reclassify_long_mlp_logits(reps: jax.Array, seg: jax.Array,
                               weight: jax.Array, bias: jax.Array,
                               *, max_tb: int = 512,
                               vmem_budget_bytes: int = 24 * 1024 * 1024) -> jax.Array:
    """Gather-at-seg + flattened Linear head of ReClassifyLongMLP.

    reps   : (B, S, H) last_hidden_state from the backbone
    seg    : (B, G)    int token positions per group
    weight : (G, G*H)  nn.Linear(H*G, G).weight
    bias   : (G,)      nn.Linear(H*G, G).bias
    returns logits (B, G) in float32
    """
    B, S, H = reps.shape
    Bs, G = seg.shape
    assert Bs == B
    K = G * H
    assert weight.shape == (G, K)
    assert bias.shape == (G,)

    # Data-dependent gather (review option (a)): only B*G*H elements are read,
    # and it avoids B*G single-row DMA micro-steps inside the kernel.
    gathered = jnp.take_along_axis(reps, seg[:, :, None].astype(jnp.int32), axis=1)  # (B, G, H)
    x = gathered.reshape(B, K)                                                       # row-major == view(-1, H*G)

    # (G_out, K) -> (K, G_out); cast once to the activation dtype so the MXU
    # sees native (e.g. bf16 x bf16 -> f32) operands.
    w_mat = jnp.transpose(weight).astype(x.dtype)
    b_row = bias.reshape(1, G).astype(jnp.float32)

    # ---- batch-tile sizing (generation-aware VMEM budget) --------------------
    itemsize = jnp.dtype(x.dtype).itemsize
    w_bytes = K * G * jnp.dtype(w_mat.dtype).itemsize

    def footprint(tb: int) -> int:
        # double-buffered x block + double-buffered (tiny) out block + weight + bias
        return 2 * tb * K * itemsize + 2 * tb * G * 4 + 2 * w_bytes + 2 * G * 4

    tb = max(8, max_tb)
    while tb > 8 and footprint(tb) > vmem_budget_bytes:
        tb //= 2
    tb = max(8, tb)
    if B <= tb:
        tb = _round_up(B, 8)          # single tile, sublane-aligned
    b_pad = _round_up(B, tb)
    if b_pad != B:
        x = jnp.pad(x, ((0, b_pad - B), (0, 0)))   # padded rows -> logits == bias, sliced off below

    grid = (b_pad // tb,)

    cost = pl.CostEstimate(
        flops=2 * b_pad * K * G,
        transcendentals=0,
        bytes_accessed=int(b_pad * K * itemsize        # activations (read once)
                           + w_bytes                   # weight (read once, resident)
                           + G * 4                     # bias
                           + b_pad * G * 4),           # logits write
    )

    out = pl.pallas_call(
        reclassify_head_kernel,
        out_shape=jax.ShapeDtypeStruct((b_pad, G), jnp.float32),
        grid_spec=pltpu.PrefetchScalarGridSpec(
            num_scalar_prefetch=0,
            grid=grid,
            in_specs=[
                # streamed activation tile
                pl.BlockSpec((tb, K), lambda i: (i, 0)),
                # full weight, constant block index -> DMA'd once, stays hot in VMEM
                pl.BlockSpec((K, G), lambda i: (0, 0)),
                # bias, resident
                pl.BlockSpec((1, G), lambda i: (0, 0)),
            ],
            out_specs=pl.BlockSpec((tb, G), lambda i: (i, 0)),
        ),
        compiler_params=pltpu.CompilerParams(
            dimension_semantics=("parallel",),         # megacore sharding over real (TB, K) tiles on v7x
            vmem_limit_bytes=32 * 1024 * 1024,         # raise v5e's 16 MiB scoped default; <= physical on all gens
        ),
        cost_estimate=cost,
    )(x, w_mat, b_row)

    return out[:B]


def reclassify_ref(reps, seg, weight, bias):
    """Pure-JAX reference mirroring the PyTorch head."""
    gathered = jnp.take_along_axis(reps, seg[:, :, None].astype(jnp.int32), axis=1)
    B, G, H = gathered.shape
    flat = gathered.reshape(B, G * H)
    return flat @ weight.T + bias


def cross_entropy_loss(logits, labels):
    logp = jax.nn.log_softmax(logits, axis=-1)
    return -jnp.mean(jnp.take_along_axis(logp, labels[:, None], axis=-1))


if __name__ == "__main__":
    key = jax.random.PRNGKey(0)

    # ---- primary test: module-consistent small shapes ------------------------
    B, S, H, G = 2, 16, 32, 4   # batch, seq_len, hidden_size, train_group_size
    k1, k2, k3, k4, k5 = jax.random.split(key, 5)

    reps = jax.random.normal(k1, (B, S, H), dtype=jnp.float32)         # backbone output
    seg = jax.random.randint(k2, (B, G), 0, S, dtype=jnp.int32)        # group token positions
    weight = 0.05 * jax.random.normal(k3, (G, G * H), dtype=jnp.float32)
    bias = 0.05 * jax.random.normal(k4, (G,), dtype=jnp.float32)
    labels = jax.random.randint(k5, (B,), 0, G, dtype=jnp.int32)

    logits = jax.block_until_ready(reclassify_long_mlp_logits(reps, seg, weight, bias))
    ref = reclassify_ref(reps, seg, weight, bias)
    assert logits.shape == (B, G)
    assert jnp.allclose(logits, ref, atol=1e-4, rtol=1e-4), (logits, ref)

    # training-path loss (plain JAX on top of the kernel logits)
    loss = jax.block_until_ready(cross_entropy_loss(logits, labels))
    ref_loss = cross_entropy_loss(ref, labels)
    assert jnp.allclose(loss, ref_loss, atol=1e-5, rtol=1e-5)

    # ---- secondary test: multi-tile grid + batch padding path -----------------
    B2, S2, H2, G2 = 20, 24, 32, 4
    j1, j2, j3, j4 = jax.random.split(jax.random.PRNGKey(1), 4)
    reps2 = jax.random.normal(j1, (B2, S2, H2), dtype=jnp.float32)
    seg2 = jax.random.randint(j2, (B2, G2), 0, S2, dtype=jnp.int32)
    weight2 = 0.05 * jax.random.normal(j3, (G2, G2 * H2), dtype=jnp.float32)
    bias2 = 0.05 * jax.random.normal(j4, (G2,), dtype=jnp.float32)

    logits2 = jax.block_until_ready(
        reclassify_long_mlp_logits(reps2, seg2, weight2, bias2, max_tb=8))  # forces grid=(3,), padded B
    ref2 = reclassify_ref(reps2, seg2, weight2, bias2)
    assert logits2.shape == (B2, G2)
    assert jnp.allclose(logits2, ref2, atol=1e-4, rtol=1e-4), (logits2, ref2)

    print("KERNEL_OK")
</pallas_src>

<mosaic_0001>
module attributes {stable_mosaic.version = 11 : i64} {
  func.func @reclassify_head_kernel(%arg0: i32, %arg1: memref<8x128xf32, #tpu.memory_space<vmem>>, %arg2: memref<128x4xf32, #tpu.memory_space<vmem>>, %arg3: memref<1x4xf32, #tpu.memory_space<vmem>>, %arg4: memref<8x4xf32, #tpu.memory_space<vmem>>) attributes {dimension_semantics = [#tpu.dimension_semantics<parallel>], iteration_bounds = array<i64: 1>, scalar_prefetch = 0 : i64, scratch_operands = 0 : i64, tpu.core_type = #tpu.core_type<tc>, window_params = [{transform_indices = @transform_0, window_bounds = array<i64: 8, 128>}, {pipeline_mode = #tpu.pipeline_mode<synchronous>, transform_indices = @transform_1, window_bounds = array<i64: 128, 4>}, {pipeline_mode = #tpu.pipeline_mode<synchronous>, transform_indices = @transform_2, window_bounds = array<i64: 1, 4>}, {transform_indices = @transform_3, window_bounds = array<i64: 8, 4>}]} {
    %c0 = arith.constant 0 : index
    %c0_0 = arith.constant 0 : index
    %0 = vector.load %arg1[%c0, %c0_0] : memref<8x128xf32, #tpu.memory_space<vmem>>, vector<8x128xf32>
    %c0_1 = arith.constant 0 : index
    %c0_2 = arith.constant 0 : index
    %1 = vector.load %arg2[%c0_1, %c0_2] : memref<128x4xf32, #tpu.memory_space<vmem>>, vector<128x4xf32>
    %cst = arith.constant dense<0.000000e+00> : vector<8x4xf32>
    %2 = tpu.matmul %0, %1, %cst {dimension_numbers = #tpu.dot_dimension_numbers<[1], [0], [0], [1], [0, 0, 1, 1], [], []>} : vector<8x128xf32>, vector<128x4xf32>, vector<8x4xf32> -> vector<8x4xf32>
    %c0_3 = arith.constant 0 : index
    %c0_4 = arith.constant 0 : index
    %3 = vector.load %arg3[%c0_3, %c0_4] : memref<1x4xf32, #tpu.memory_space<vmem>>, vector<1x4xf32>
    %4 = vector.broadcast %3 : vector<1x4xf32> to vector<8x4xf32>
    %5 = arith.addf %2, %4 : vector<8x4xf32>
    %c0_5 = arith.constant 0 : index
    %c0_6 = arith.constant 0 : index
    %6 = vector.load %arg4[%c0_5, %c0_6] : memref<8x4xf32, #tpu.memory_space<vmem>>, vector<8x4xf32>
    tpu.vector_store %arg4[%c0_5, %c0_6], %5 {strides = array<i32>} : memref<8x4xf32, #tpu.memory_space<vmem>>, vector<8x4xf32>,
    return
  }
  func.func @transform_0(%arg0: i32) -> (i32, i32) {
    %c0_i32 = arith.constant 0 : i32
    %c0_i32_0 = arith.constant 0 : i32
    return %arg0, %c0_i32 : i32, i32
  }
  func.func @transform_1(%arg0: i32) -> (i32, i32) {
    %c0_i32 = arith.constant 0 : i32
    %c0_i32_0 = arith.constant 0 : i32
    %c0_i32_1 = arith.constant 0 : i32
    return %c0_i32, %c0_i32_0 : i32, i32
  }
  func.func @transform_2(%arg0: i32) -> (i32, i32) {
    %c0_i32 = arith.constant 0 : i32
    %c0_i32_0 = arith.constant 0 : i32
    %c0_i32_1 = arith.constant 0 : i32
    return %c0_i32, %c0_i32_0 : i32, i32
  }
  func.func @transform_3(%arg0: i32) -> (i32, i32) {
    %c0_i32 = arith.constant 0 : i32
    %c0_i32_0 = arith.constant 0 : i32
    return %arg0, %c0_i32 : i32, i32
  }
}

</mosaic_0001>

<llo_original>
// kernel: tpu_custom_call.1
$region0: #{tpu_custom_call.1}
  #allocation0 [shape = 'u32[]', space=smem, size = 0x4, offset = 0x4, fixed_abs, tag = 'smem constant byte address 0x4 - core index']
  #allocation1 [shape = 'u32[72,128]{1,0:T(1,128)}', space=vmem, size = 0x9000, scoped, tag = 'internal scratch']
  %s0 = inlined_call_operand.vmem [shape: f32[8,128], index: 0, kind: input, shape index: {}]
  %s1 = inlined_call_operand.vmem [shape: f32[128,4], index: 1, kind: input, shape index: {}]
  %s2 = inlined_call_operand.vmem [shape: f32[1,4], index: 2, kind: input, shape index: {}]
  %s3 = inlined_call_operand.vmem [shape: f32[8,4], index: 3, kind: output, shape index: {}]
  %s4 = sld [smem:[#allocation0]]
  $region22: #{tpu_custom_call.1} parent=0
    _
  %s6 = ssub.s32 1, %s4
  %s7 = scalar_select 0, %s6, %s4
  // Predicated region
  $region2: #{tpu_custom_call.1} parent=0 // pred_check
    _
  $region3: #{tpu_custom_call.1} parent=0 // pred_check_branch
    %9 = sbr.rel (0) target = $region5
  $region4: #{tpu_custom_call.1} parent=0 // pred_region
    _
  $region5: #{tpu_custom_call.1} parent=0 // pred_fallthru
    _
  // Predicated region
  $region6: #{tpu_custom_call.1} parent=0 // pred_check
    _
  $region7: #{tpu_custom_call.1} parent=0 // pred_check_branch
    %11 = sbr.rel (0) target = $region9
  $region8: #{tpu_custom_call.1} parent=0 // pred_region
    _
  $region9: #{tpu_custom_call.1} parent=0 // pred_fallthru
    _
  // Predicated region
  $region10: #{tpu_custom_call.1} parent=0 // pred_check
    _
  $region11: #{tpu_custom_call.1} parent=0 // pred_check_branch
    %13 = sbr.rel (0) target = $region13
  $region12: #{tpu_custom_call.1} parent=0 // pred_region
    _
  $region13: #{tpu_custom_call.1} parent=0 // pred_fallthru
    _
  %v14 = vld [vmem:[%s0] sm:$0xff]
  %v15 = vld [vmem:[%s1] sm:$0xff]
  %v16 = vld [vmem:[%s1 + $0x8] sm:$0xff]
  %v17 = vld [vmem:[%s1 + $0x10] sm:$0xff]
  %v18 = vld [vmem:[%s1 + $0x18] sm:$0xff]
  %v19 = vld [vmem:[%s1 + $0x20] sm:$0xff]
  %v20 = vld [vmem:[%s1 + $0x28] sm:$0xff]
  %v21 = vld [vmem:[%s1 + $0x30] sm:$0xff]
  %v22 = vld [vmem:[%s1 + $0x38] sm:$0xff]
  %v23 = vld [vmem:[%s1 + $0x40] sm:$0xff]
  %v24 = vld [vmem:[%s1 + $0x48] sm:$0xff]
  %v25 = vld [vmem:[%s1 + $0x50] sm:$0xff]
  %v26 = vld [vmem:[%s1 + $0x58] sm:$0xff]
  %v27 = vld [vmem:[%s1 + $0x60] sm:$0xff]
  %v28 = vld [vmem:[%s1 + $0x68] sm:$0xff]
  %v29 = vld [vmem:[%s1 + $0x70] sm:$0xff]
  %v30 = vld [vmem:[%s1 + $0x78] sm:$0xff]
  %v31 = vld [vmem:[%s2] sm:$0x1]
  %v33 = vperm.slane %v31, 0
  %35 = vmatpush.msra.mxu0 %v30
  %36 = vmatpush.msra.mxu0 %v29
  %37 = vmatpush.msra.mxu0 %v28
  %38 = vmatpush.msra.mxu0 %v27
  %39 = vmatpush.msra.mxu0 %v26
  %40 = vmatpush.msra.mxu0 %v25
  %41 = vmatpush.msra.mxu0 %v24
  %42 = vmatpush.msra.mxu0 %v23
  %43 = vmatpush.msra.mxu0 %v22
  %44 = vmatpush.msra.mxu0 %v21
  %45 = vmatpush.msra.mxu0 %v20
  %46 = vmatpush.msra.mxu0 %v19
  %47 = vmatpush.msra.mxu0 %v18
  %48 = vmatpush.msra.mxu0 %v17
  %49 = vmatpush.msra.mxu0 %v16
  %50 = vmatpush.msra.mxu0 %v15
  %51 = vmatmul.f32.gmra.mxu0 %v14
  %v52 = vpop.f32.mrf.mxu0
  %v53 = vadd.f32 %v33, %v52
  %54 = vdwg.mxu0
  %vm55 = vcmask 31744
  %56 = vst.msk [vmem:[%s3] sm:$0xff] %vm55, %v53
  // Predicated region
  $region14: #{tpu_custom_call.1} parent=0 // pred_check
    _
  $region15: #{tpu_custom_call.1} parent=0 // pred_check_branch
    %58 = sbr.rel (0) target = $region17
  $region16: #{tpu_custom_call.1} parent=0 // pred_region
    _
  $region17: #{tpu_custom_call.1} parent=0 // pred_fallthru
    _
  // Predicated region
  $region18: #{tpu_custom_call.1} parent=0 // pred_check
    _
  $region19: #{tpu_custom_call.1} parent=0 // pred_check_branch
    %60 = sbr.rel (0) target = $region21
  $region20: #{tpu_custom_call.1} parent=0 // pred_region
    _
  $region21: #{tpu_custom_call.1} parent=0 // pred_fallthru
    _

</llo_original>
